<compile_context>
chip_gen: v7x
topology: tpu7x:2x2x1
jax: 0.10.0
libtpu: 0.0.40
codegen_flags: <defaults>
</compile_context>

<pallas_src>
import functools
import math

import jax
import jax.numpy as jnp
from jax.experimental import pallas as pl
from jax.experimental.pallas import tpu as pltpu


# ---------------------------------------------------------------------------
# Tiling helpers
# ---------------------------------------------------------------------------
def _round_up(x, m):
    return ((x + m - 1) // m) * m


def _choose_tile(dim, target, multiple):
    """Return (tile, padded_dim): tile is a multiple of `multiple`, <= ~target.

    Prefers a divisor of `dim` (no padding); otherwise returns a bounded tile and
    the zero-padded extent.  Never falls back to a full-dim tile (the old
    VMEM-cliff failure mode when `dim` has no 8/128-multiple divisor).
    """
    cap = min(target, dim)
    t = cap - cap % multiple
    best = 0
    while t >= multiple:
        if dim % t == 0:
            best = t
            break
        t -= multiple
    if best >= max(multiple, cap // 2):
        return best, dim
    tile = min(target, _round_up(dim, multiple))
    tile = max(tile - tile % multiple, multiple)
    return tile, _round_up(dim, tile)


# ---------------------------------------------------------------------------
# Kernel 1: supports_flat = A2d @ vertex, A2d = A.reshape(R*N, N)
#   grid = (M/tm, K/tk)  (rows "parallel", contraction last, "arbitrary")
#   vertex is VMEM-resident (constant index_map); f32 accumulation directly in
#   the revisited output block.
# ---------------------------------------------------------------------------
def _supports_kernel(a_ref, v_ref, o_ref, *, tk):
    k = pl.program_id(1)

    @pl.when(k == 0)
    def _():
        o_ref[...] = jnp.zeros_like(o_ref)

    off = pl.multiple_of(k * tk, tk)          # tk is a multiple of 128 (sublane aligned)
    o_ref[...] += jnp.dot(a_ref[...], v_ref[pl.ds(off, tk), :],
                          preferred_element_type=jnp.float32)


def compute_supports(A2d, vertex, *, tile_m=512, tile_k=2048, a_buffers=None):
    """(M, K) @ (K, D) -> (M, D) f32, tiled for the HBM-bound adjacency read."""
    M, K = A2d.shape
    Kv, D = vertex.shape
    assert Kv == K

    row_mult = 16 if A2d.dtype == jnp.bfloat16 else 8      # native bf16 tile is (16,128)
    tm, M_pad = _choose_tile(M, tile_m, row_mult)
    tk, K_pad = _choose_tile(K, tile_k, 128)

    # Zero-pad only when needed (zero A cols x zero vertex rows contribute 0;
    # padded output rows are sliced off below).
    if M_pad != M or K_pad != K:
        A2d = jnp.pad(A2d, ((0, M_pad - M), (0, K_pad - K)))
    if K_pad != K:
        vertex = jnp.pad(vertex, ((0, K_pad - K), (0, 0)))

    grid = (M_pad // tm, K_pad // tk)

    # Explicit VMEM budget (A double-buffer + resident vertex + f32 out blocks),
    # clamped so it never exceeds the 32 MiB default scoped limit of v6e / v7x
    # (v7x has only 64 MiB physical VMEM) but raises v5e's 16 MiB when needed.
    vmem_est = (2 * tm * tk * A2d.dtype.itemsize
                + 2 * K_pad * D * vertex.dtype.itemsize
                + 2 * tm * D * 4)
    vmem_limit = int(min(max(2 * vmem_est, 16 << 20), 32 << 20))

    a_spec_kwargs = {}
    if a_buffers is not None:                  # sweepable knob if DMA is still exposed
        a_spec_kwargs["pipeline_mode"] = pl.Buffered(a_buffers)

    out = pl.pallas_call(
        functools.partial(_supports_kernel, tk=tk),
        out_shape=jax.ShapeDtypeStruct((M_pad, D), jnp.float32),
        grid_spec=pltpu.PrefetchScalarGridSpec(
            num_scalar_prefetch=0,
            grid=grid,
            in_specs=[
                pl.BlockSpec((tm, tk), lambda i, k: (i, k), **a_spec_kwargs),
                pl.BlockSpec((K_pad, D), lambda i, k: (0, 0)),   # vertex: VMEM-resident
            ],
            out_specs=pl.BlockSpec((tm, D), lambda i, k: (i, 0)),
        ),
        compiler_params=pltpu.CompilerParams(
            dimension_semantics=("parallel", "arbitrary"),
            vmem_limit_bytes=vmem_limit),
        cost_estimate=pl.CostEstimate(
            flops=2 * M_pad * K_pad * D,
            transcendentals=0,
            bytes_accessed=(M_pad * K_pad * A2d.dtype.itemsize
                            + K_pad * D * vertex.dtype.itemsize
                            + M_pad * D * 4)),
    )(A2d, vertex)

    if M_pad != M:
        out = out[:M]
    return out


# ---------------------------------------------------------------------------
# Kernel 2: output = (supports2d @ V2d) * rowscale + bias   (all f32, tiny)
#   Common case K = D*R <= tile_k: single k step, no accumulator, direct fused store.
# ---------------------------------------------------------------------------
def _output_kernel_single(s_ref, v_ref, scale_ref, b_ref, o_ref):
    out = jnp.dot(s_ref[...], v_ref[...], preferred_element_type=jnp.float32)
    o_ref[...] = (out * scale_ref[...] + b_ref[...]).astype(o_ref.dtype)


def _output_kernel_multi(s_ref, v_ref, scale_ref, b_ref, o_ref, acc_ref):
    k = pl.program_id(1)

    @pl.when(k == 0)
    def _():
        acc_ref[...] = jnp.zeros_like(acc_ref)

    acc_ref[...] += jnp.dot(s_ref[...], v_ref[...],
                            preferred_element_type=jnp.float32)

    @pl.when(k == pl.num_programs(1) - 1)
    def _():
        o_ref[...] = (acc_ref[...] * scale_ref[...] + b_ref[...]).astype(o_ref.dtype)


def compute_output(supports2d, V2d, rowscale, bias_row, *, tile_rows=1024, tile_k=2048):
    Nr, K = supports2d.shape
    _, H = V2d.shape

    row_mult = 16 if supports2d.dtype == jnp.bfloat16 else 8
    to, Nr_pad = _choose_tile(Nr, tile_rows, row_mult)
    if Nr_pad != Nr:
        supports2d = jnp.pad(supports2d, ((0, Nr_pad - Nr), (0, 0)))
        rowscale = jnp.pad(rowscale, ((0, Nr_pad - Nr), (0, 0)))

    if K <= tile_k:
        # Overhead-bound fast path: one k step, no accumulator, no pl.when.
        out = pl.pallas_call(
            _output_kernel_single,
            out_shape=jax.ShapeDtypeStruct((Nr_pad, H), jnp.float32),
            grid_spec=pltpu.PrefetchScalarGridSpec(
                num_scalar_prefetch=0,
                grid=(Nr_pad // to,),
                in_specs=[
                    pl.BlockSpec((to, K), lambda i: (i, 0)),
                    pl.BlockSpec((K, H), lambda i: (0, 0)),
                    pl.BlockSpec((to, 1), lambda i: (i, 0)),
                    pl.BlockSpec((1, H), lambda i: (0, 0)),
                ],
                out_specs=pl.BlockSpec((to, H), lambda i: (i, 0)),
            ),
            compiler_params=pltpu.CompilerParams(
                dimension_semantics=("parallel",)),
        )(supports2d, V2d, rowscale, bias_row)
    else:
        tk, K_pad = _choose_tile(K, tile_k, 128)
        if K_pad != K:
            supports2d = jnp.pad(supports2d, ((0, 0), (0, K_pad - K)))
            V2d = jnp.pad(V2d, ((0, K_pad - K), (0, 0)))
        out = pl.pallas_call(
            _output_kernel_multi,
            out_shape=jax.ShapeDtypeStruct((Nr_pad, H), jnp.float32),
            grid_spec=pltpu.PrefetchScalarGridSpec(
                num_scalar_prefetch=0,
                grid=(Nr_pad // to, K_pad // tk),
                in_specs=[
                    pl.BlockSpec((to, tk), lambda i, k: (i, k)),
                    pl.BlockSpec((tk, H), lambda i, k: (k, 0)),
                    pl.BlockSpec((to, 1), lambda i, k: (i, 0)),
                    pl.BlockSpec((1, H), lambda i, k: (0, 0)),
                ],
                out_specs=pl.BlockSpec((to, H), lambda i, k: (i, 0)),
                scratch_shapes=[pltpu.VMEM((to, H), jnp.float32)],
            ),
            compiler_params=pltpu.CompilerParams(
                dimension_semantics=("parallel", "arbitrary")),
        )(supports2d, V2d, rowscale, bias_row)

    if Nr_pad != Nr:
        out = out[:Nr]
    return out


# ---------------------------------------------------------------------------
# RPGCLayer: parameters + glue.  The hot path (A-sized matmul) is kernel 1;
# the basis combination V is a tiny single jnp matmul.
# ---------------------------------------------------------------------------
def _xavier_uniform(key, shape):
    fan_in, fan_out = shape
    bound = math.sqrt(6.0 / (fan_in + fan_out))
    return jax.random.uniform(key, shape, jnp.float32, -bound, bound)


class RPGCLayer:
    def __init__(self, input_dim, h_dim, num_objects, num_base, featureless,
                 drop_prob, key, compute_dtype=jnp.float32,
                 tile_m=512, tile_k=2048, tile_out_rows=1024, a_buffers=None):
        self.num_base = num_base
        self.input_dim = input_dim
        self.h_dim = h_dim
        self.num_objects = num_objects
        self.featureless = featureless
        self.drop_prob = drop_prob
        self.compute_dtype = compute_dtype
        self.tile_m = tile_m
        self.tile_k = tile_k
        self.tile_out_rows = tile_out_rows
        self.a_buffers = a_buffers
        k1, k2 = jax.random.split(key)
        if num_base > 0:
            self.W = _xavier_uniform(k1, (input_dim * num_base, h_dim))
            self.W_comp = _xavier_uniform(k2, (num_objects, num_base))
        else:
            self.W = _xavier_uniform(k1, (input_dim * num_objects, h_dim))
            self.W_comp = None
        self.B = jnp.zeros((h_dim,), jnp.float32)

    def _effective_V(self):
        """(D*R, H) f32, matching torch's W_comp @ reshape(W).permute(1,0,2)."""
        if self.num_base > 0:
            T = jnp.matmul(self.W_comp,
                           self.W.reshape(self.num_base, self.input_dim * self.h_dim))
            return (T.reshape(self.num_objects, self.input_dim, self.h_dim)
                      .transpose(1, 0, 2)
                      .reshape(self.input_dim * self.num_objects, self.h_dim))
        return self.W

    def __call__(self, vertex, A, dropout_key=None):
        R, N, _ = A.shape
        cd = self.compute_dtype

        # NOTE: do NOT cast the (large, static) adjacency per call — store/cache it in
        # compute_dtype once outside the hot loop; the cast here only fires if needed.
        A_c = A if A.dtype == cd else A.astype(cd)
        v_c = vertex.astype(cd)

        # Fold R into the row axis: (R, N, N) -> (R*N, N) free row-major view;
        # one large "parallel" row axis for even 2-TC sharding on v7x.
        A2d = A_c.reshape(R * N, N)
        supports_flat = compute_supports(A2d, v_c, tile_m=self.tile_m,
                                         tile_k=self.tile_k,
                                         a_buffers=self.a_buffers)        # (R*N, D) f32
        # Raw row-major reshape, exactly as torch: (R, N, D) -> (N, D*R).
        supports2d = supports_flat.reshape(N, self.input_dim * self.num_objects)

        V2d = self._effective_V()                                          # (D*R, H) f32

        # featureless row-dropout scale (torch: F.dropout(ones(N)) applied per row).
        if self.featureless:
            if dropout_key is None:
                dropout_key = jax.random.PRNGKey(0)
            keep = 1.0 - self.drop_prob
            mask = jax.random.bernoulli(dropout_key, keep, (N,))
            rowscale = (mask.astype(jnp.float32) / keep).reshape(N, 1)
        else:
            rowscale = jnp.ones((N, 1), jnp.float32)

        bias_row = self.B.reshape(1, self.h_dim)
        return compute_output(supports2d, V2d, rowscale, bias_row,
                              tile_rows=self.tile_out_rows)                # (N, H) f32


# ---------------------------------------------------------------------------
# Pure-JAX reference (mirrors the torch forward exactly).  Matmul #1 runs in
# A.dtype with f32 accumulation; everything downstream in f32 — the same
# numerics contract as the kernel path.
# ---------------------------------------------------------------------------
def reference_forward(layer, vertex, A, rowscale):
    supports = jnp.matmul(A, vertex.astype(A.dtype),
                          preferred_element_type=jnp.float32)
    supports = supports.reshape(-1, layer.input_dim * layer.num_objects)
    if layer.num_base > 0:
        W3 = layer.W.reshape(layer.num_base, layer.input_dim, layer.h_dim)
        V = jnp.matmul(layer.W_comp, jnp.transpose(W3, (1, 0, 2)))
        V = V.reshape(layer.input_dim * layer.num_objects, layer.h_dim)
        out = supports @ V
    else:
        out = supports @ layer.W
    out = out * rowscale
    return out + layer.B


if __name__ == "__main__":
    key = jax.random.PRNGKey(0)
    k_param, k_vertex, k_A = jax.random.split(key, 3)

    # Small shapes consistent with the module; tile_k=128 so the demo exercises
    # >1 contraction step (production default is tile_k=2048).
    input_dim, h_dim = 16, 32          # D, H
    num_objects, num_base = 4, 2       # R (relations), B (bases)
    nodes_num = 256                    # N
    featureless, drop_prob = False, 0.5

    vertex = jax.random.normal(k_vertex, (nodes_num, input_dim), jnp.float32)
    A = jax.random.normal(k_A, (num_objects, nodes_num, nodes_num), jnp.float32)

    # ---- f32 compute path ----
    layer = RPGCLayer(input_dim, h_dim, num_objects, num_base, featureless,
                      drop_prob, k_param, compute_dtype=jnp.float32,
                      tile_m=512, tile_k=128)
    ref = reference_forward(layer, vertex, A, jnp.ones((nodes_num, 1), jnp.float32))
    out = jax.block_until_ready(layer(vertex, A))
    assert out.shape == (nodes_num, h_dim)
    # Tolerance covers TPU default-precision f32 matmul differences; an indexing /
    # reshape bug would be off by O(10).
    assert jnp.allclose(out, ref, atol=5e-2, rtol=5e-2), "f32 mismatch vs reference"

    # ---- bf16 compute path: adjacency pre-cast ONCE (cached) per the perf review ----
    layer_bf16 = RPGCLayer(input_dim, h_dim, num_objects, num_base, featureless,
                           drop_prob, k_param, compute_dtype=jnp.bfloat16,
                           tile_m=512, tile_k=128)
    A_bf16 = A.astype(jnp.bfloat16)            # cache this outside the hot loop
    ref_bf16 = reference_forward(layer_bf16, vertex, A_bf16,
                                 jnp.ones((nodes_num, 1), jnp.float32))
    out_bf16 = jax.block_until_ready(layer_bf16(vertex, A_bf16))
    assert out_bf16.shape == (nodes_num, h_dim)
    # Compared against a bf16-input reference (same rounding of A/vertex, f32 accum),
    # so only accumulation-order differences remain — tight tolerance.
    assert jnp.allclose(out_bf16, ref_bf16, atol=5e-2, rtol=5e-3), \
        "bf16 mismatch vs bf16 reference"

    print("KERNEL_OK")
</pallas_src>

<mosaic_0001>
module attributes {stable_mosaic.version = 11 : i64} {
  func.func @_supports_kernel(%arg0: i32, %arg1: i32, %arg2: memref<512x128xf32, #tpu.memory_space<vmem>>, %arg3: memref<256x16xf32, #tpu.memory_space<vmem>>, %arg4: memref<512x16xf32, #tpu.memory_space<vmem>>) attributes {dimension_semantics = [#tpu.dimension_semantics<parallel>, #tpu.dimension_semantics<arbitrary>], iteration_bounds = array<i64: 2, 2>, scalar_prefetch = 0 : i64, scratch_operands = 0 : i64, tpu.core_type = #tpu.core_type<tc>, window_params = [{transform_indices = @transform_0, window_bounds = array<i64: 512, 128>}, {pipeline_mode = #tpu.pipeline_mode<synchronous>, transform_indices = @transform_1, window_bounds = array<i64: 256, 16>}, {transform_indices = @transform_2, window_bounds = array<i64: 512, 16>}]} {
    %c0_i32 = arith.constant 0 : i32
    %0 = arith.cmpi eq, %arg1, %c0_i32 : i32
    %1 = arith.extui %0 : i1 to i32
    %c0_i32_0 = arith.constant 0 : i32
    %2 = arith.cmpi ne, %1, %c0_i32_0 : i32
    scf.if %2 {
      %cst_7 = arith.constant 0.000000e+00 : f32
      %12 = vector.broadcast %cst_7 : f32 to vector<512x16xf32>
      %c0_8 = arith.constant 0 : index
      %c0_9 = arith.constant 0 : index
      %13 = vector.load %arg4[%c0_8, %c0_9] : memref<512x16xf32, #tpu.memory_space<vmem>>, vector<512x16xf32>
      tpu.vector_store %arg4[%c0_8, %c0_9], %12 {strides = array<i32>} : memref<512x16xf32, #tpu.memory_space<vmem>>, vector<512x16xf32>,
    } else {
    }
    %c128_i32 = arith.constant 128 : i32
    %3 = arith.muli %arg1, %c128_i32 : i32
    %4 = tpu.assume_multiple %3, 128 : i32
    %c0 = arith.constant 0 : index
    %c0_1 = arith.constant 0 : index
    %5 = vector.load %arg4[%c0, %c0_1] : memref<512x16xf32, #tpu.memory_space<vmem>>, vector<512x16xf32>
    %c0_2 = arith.constant 0 : index
    %c0_3 = arith.constant 0 : index
    %6 = vector.load %arg2[%c0_2, %c0_3] : memref<512x128xf32, #tpu.memory_space<vmem>>, vector<512x128xf32>
    %7 = arith.index_cast %4 : i32 to index
    %c0_4 = arith.constant 0 : index
    %8 = vector.load %arg3[%7, %c0_4] : memref<256x16xf32, #tpu.memory_space<vmem>>, vector<128x16xf32>
    %cst = arith.constant dense<0.000000e+00> : vector<512x16xf32>
    %9 = tpu.matmul %6, %8, %cst {dimension_numbers = #tpu.dot_dimension_numbers<[1], [0], [0], [1], [0, 0, 1, 1], [], []>} : vector<512x128xf32>, vector<128x16xf32>, vector<512x16xf32> -> vector<512x16xf32>
    %10 = arith.addf %5, %9 : vector<512x16xf32>
    %c0_5 = arith.constant 0 : index
    %c0_6 = arith.constant 0 : index
    %11 = vector.load %arg4[%c0_5, %c0_6] : memref<512x16xf32, #tpu.memory_space<vmem>>, vector<512x16xf32>
    tpu.vector_store %arg4[%c0_5, %c0_6], %10 {strides = array<i32>} : memref<512x16xf32, #tpu.memory_space<vmem>>, vector<512x16xf32>,
    return
  }
  func.func @transform_0(%arg0: i32, %arg1: i32) -> (i32, i32) {
    %c0_i32 = arith.constant 0 : i32
    return %arg0, %arg1 : i32, i32
  }
  func.func @transform_1(%arg0: i32, %arg1: i32) -> (i32, i32) {
    %c0_i32 = arith.constant 0 : i32
    %c0_i32_0 = arith.constant 0 : i32
    %c0_i32_1 = arith.constant 0 : i32
    return %c0_i32, %c0_i32_0 : i32, i32
  }
  func.func @transform_2(%arg0: i32, %arg1: i32) -> (i32, i32) {
    %c0_i32 = arith.constant 0 : i32
    %c0_i32_0 = arith.constant 0 : i32
    return %arg0, %c0_i32 : i32, i32
  }
}

</mosaic_0001>

<llo_original>
// kernel: tpu_custom_call.1
$region0: #{tpu_custom_call.1}
  #allocation0 [shape = 'u32[]', space=smem, size = 0x4, offset = 0x4, fixed_abs, tag = 'smem constant byte address 0x4 - core index']
  #allocation1 [shape = 'u32[144,128]{1,0:T(1,128)}', space=vmem, size = 0x12000, scoped, tag = 'internal scratch']
  %s0 = inlined_call_operand.hbm [shape: f32[1024,256], index: 0, kind: input, shape index: {}]
  %s1 = inlined_call_operand.vmem [shape: f32[256,16], index: 1, kind: input, shape index: {}]
  %s2 = inlined_call_operand.vmem [shape: f32[1024,16], index: 2, kind: output, shape index: {}]
  %s3 = sld [smem:[#allocation0]]
  $region49: #{tpu_custom_call.1} parent=0
    _
  %s5 = ssub.s32 1, %s3
  %s6 = scalar_select 0, %s5, %s3
  $region1: #{tpu_custom_call.1} parent=0
    #allocation2 [shape = 'u8[524288]{0}', space=vmem, size = 0x80000, scoped, tag = 'input window, operand 0']
    #allocation3 [shape = 's32[2]{0}', space=sflag, size = 0x8, scoped, tag = 'scoped memory for tpu_custom_call.1']
    %7 = vsyncpa [#allocation3], 0
    %s8 = scalar_lea.sflag [#allocation3], 1
    %9 = vsyncpa %s8, 0
    loop: start=0, step=1, limit=6
    $region2: #{tpu_custom_call.1} parent=1 // loop_pre_header
      _
    $region3: #{tpu_custom_call.1} parent=1 // loop_header
      %s11 = sphi 0, %s15
      %p12 = scmp.ge.s32.totalorder %s11, 6
      %s18 = sphi 0, %s30
      %s19 = sphi 0, %s26
      %s20 = sphi 0, %s18
      %s21 = sphi 0, %s19
      %s22 = sphi 0, %s20
      %s23 = sphi 0, %s21
      %s35 = sphi 0, %s37
      %s38 = sphi 0, %s35
      %s39 = sphi 0, %s38
      %s55 = sphi 0, %s39
      %s59 = sphi 0, %s59
      %s61 = sphi 0, %s59
      %s62 = sphi 0, %s61
      %s76 = sphi 0, %s62
      %s82 = sphi 0, %s84
      %s85 = sphi 0, %s82
      %s86 = sphi 0, %s85
      %s102 = sphi 0, %s86
    $region4: #{tpu_custom_call.1} parent=1 // loop_header_branch
      %14 = sbr.rel (%p12) target = $region8
    $region5: #{tpu_custom_call.1} parent=1 // loop_body
      %s16 = ssub.s32 %s11, 1
      %s17 = ssub.s32 %s11, 2
      %s24 = sadd.s32 1, %s19
      %p25 = scmp.ge.s32.totalorder %s24, 2
      %s26 = scalar_select %p25, 0, %s24
      %s27 = sadd.s32 1, %s18
      %s28 = scalar_select %p25, %s27, %s18
      %p29 = scmp.ge.s32.totalorder %s28, 2
      %s30 = scalar_select %p29, 0, %s28
      %s31 = ssub.s32 %s18, %s30
      %s32 = ssub.s32 %s19, %s26
      %s33 = sor.u32 %s31, %s32
      %p34 = scmp.eq.s32.totalorder %s33, 0
      %s36 = sadd.s32 %s35, 1
      %s37 = scalar_select %p34, %s35, %s36
      %p40 = pneg %p34
      %p41 = scmp.eq.s32.totalorder %s11, 3
      %p42 = por %p40, %p41
      %p43 = scmp.ne.s32.totalorder %s35, %s38
      %p44 = scmp.eq.s32.totalorder %s11, 0
      %p45 = por %p43, %p44
      %p46 = scmp.ne.s32.totalorder %s35, %s38
      %p47 = scmp.eq.s32.totalorder %s16, 3
      %p48 = por %p46, %p47
      %p49 = scmp.ne.s32.totalorder %s38, %s39
      %p50 = scmp.eq.s32.totalorder %s16, 0
      %p51 = por %p49, %p50
      %p52 = scmp.ne.s32.totalorder %s38, %s39
      %p53 = scmp.eq.s32.totalorder %s17, 3
      %p54 = por %p52, %p53
      %p56 = scmp.ne.s32.totalorder %s39, %s55
      %p57 = scmp.eq.s32.totalorder %s17, 0
      %p58 = por %p56, %p57
      %s60 = sadd.s32 %s59, 1
      %p63 = scmp.eq.s32.totalorder %s11, 3
      %p64 = scmp.ne.s32.totalorder %s59, %s61
      %p65 = scmp.eq.s32.totalorder %s11, 0
      %p66 = por %p64, %p65
      %p67 = scmp.ne.s32.totalorder %s59, %s61
      %p68 = scmp.eq.s32.totalorder %s16, 3
      %p69 = por %p67, %p68
      %p70 = scmp.ne.s32.totalorder %s61, %s62
      %p71 = scmp.eq.s32.totalorder %s16, 0
      %p72 = por %p70, %p71
      %p73 = scmp.ne.s32.totalorder %s61, %s62
      %p74 = scmp.eq.s32.totalorder %s17, 3
      %p75 = por %p73, %p74
      %p77 = scmp.ne.s32.totalorder %s62, %s76
      %p78 = scmp.eq.s32.totalorder %s17, 0
      %p79 = por %p77, %p78
      %s80 = ssub.s32 %s18, %s30
      %p81 = scmp.eq.s32.totalorder %s80, 0
      %s83 = sadd.s32 %s82, 1
      %s84 = scalar_select %p81, %s82, %s83
      %p87 = pneg %p81
      %p88 = scmp.eq.s32.totalorder %s11, 3
      %p89 = por %p87, %p88
      %p90 = scmp.ne.s32.totalorder %s82, %s85
      %p91 = scmp.eq.s32.totalorder %s11, 0
      %p92 = por %p90, %p91
      %p93 = scmp.ne.s32.totalorder %s82, %s85
      %p94 = scmp.eq.s32.totalorder %s16, 3
      %p95 = por %p93, %p94
      %p96 = scmp.ne.s32.totalorder %s85, %s86
      %p97 = scmp.eq.s32.totalorder %s16, 0
      %p98 = por %p96, %p97
      %p99 = scmp.ne.s32.totalorder %s85, %s86
      %p100 = scmp.eq.s32.totalorder %s17, 3
      %p101 = por %p99, %p100
      %p103 = scmp.ne.s32.totalorder %s86, %s102
      %p104 = scmp.eq.s32.totalorder %s17, 0
      %p105 = por %p103, %p104
      %p106 = scmp.le.s32.totalorder 1, %s11
      %p107 = scmp.lt.s32.totalorder %s11, 5
      %p108 = pnand %p106, %p107
      %p109 = pneg %p108
      // Predicated region
      $region9: #{tpu_custom_call.1} parent=5 // pred_check
        _
      $region10: #{tpu_custom_call.1} parent=5 // pred_check_branch
        %111 = sbr.rel (%p108) target = $region12
      $region11: #{tpu_custom_call.1} parent=5 // pred_region
        %s112 = ssub.s32 %s11, 1
        // Predicated region
        $region13: #{tpu_custom_call.1} parent=11 // pred_check
          %p113 = pneg %p72
        $region14: #{tpu_custom_call.1} parent=11 // pred_check_branch
          %115 = sbr.rel (%p113) target = $region16
        $region15: #{tpu_custom_call.1} parent=11 // pred_region
          _
        $region16: #{tpu_custom_call.1} parent=11 // pred_fallthru
          _
      $region12: #{tpu_custom_call.1} parent=5 // pred_fallthru
        _
      %p116 = scmp.lt.s32.totalorder %s11, 4
      // Predicated region
      $region17: #{tpu_custom_call.1} parent=5 // pred_check
        %p117 = pneg %p116
      $region18: #{tpu_custom_call.1} parent=5 // pred_check_branch
        %119 = sbr.rel (%p117) target = $region20
      $region19: #{tpu_custom_call.1} parent=5 // pred_region
        // Predicated region
        $region21: #{tpu_custom_call.1} parent=19 // pred_check
          %p120 = pneg %p45
        $region22: #{tpu_custom_call.1} parent=19 // pred_check_branch
          %122 = sbr.rel (%p120) target = $region24
        $region23: #{tpu_custom_call.1} parent=19 // pred_region
          %s123 = sand.u32 %s35, 1
          %s124 = scalar_lea.sflag [#allocation3], %s123
          %s125 = sand.u32 %s35, 1
          %s126 = smul.addr %s125, 512
          %s127 = scalar_lea.vmem [#allocation2], %s126
          %s128 = smul.u32 64, %s18
          %s130 = ssub.s32 8192, 8192
          %131 = vsyncadd %s124, %s130
          %s132 = smul.addr %s128, 2
          %s133 = sadd.s32 %s19, %s132
          %s134 = smul.addr %s133, 128
          %s135 = scalar_lea.hbm %s0, %s134
          %s136 = sshll.u32 %s127, 4
          %s137 = int_to_ptr.vmem [resolvable:$true] %s136
          %142 = dma.hbm_to_vmem [thread:$0]  %s135, 8192, %s137, %s124, 256, 128, 8
        $region24: #{tpu_custom_call.1} parent=19 // pred_fallthru
          _
      $region20: #{tpu_custom_call.1} parent=5 // pred_fallthru
        _
      %p143 = scmp.le.s32.totalorder 1, %s11
      %p144 = scmp.lt.s32.totalorder %s11, 5
      %p145 = pnand %p143, %p144
      %p146 = pneg %p145
      // Predicated region
      $region25: #{tpu_custom_call.1} parent=5 // pred_check
        _
      $region26: #{tpu_custom_call.1} parent=5 // pred_check_branch
        %148 = sbr.rel (%p145) target = $region28
      $region27: #{tpu_custom_call.1} parent=5 // pred_region
        %s149 = ssub.s32 %s11, 1
        %s150 = sand.u32 %s38, 1
        %s151 = scalar_lea.sflag [#allocation3], %s150
        %s152 = sand.u32 %s38, 1
        %s153 = smul.addr %s152, 512
        %s154 = scalar_lea.vmem [#allocation2], %s153
        // Predicated region
        $region29: #{tpu_custom_call.1} parent=27 // pred_check
          %p155 = pneg %p51
        $region30: #{tpu_custom_call.1} parent=27 // pred_check_branch
          %157 = sbr.rel (%p155) target = $region32
        $region31: #{tpu_custom_call.1} parent=27 // pred_region
          %158 = dma.done %s151, 8192
        $region32: #{tpu_custom_call.1} parent=27 // pred_fallthru
          _
        %s159 = sand.u32 %s38, 1
        %s160 = scalar_lea.sflag [#allocation3], %s159
        %s161 = sand.u32 %s38, 1
        %s162 = smul.addr %s161, 512
        %s163 = scalar_lea.vmem [#allocation2], %s162
        %p164 = pneg %p51
        %p165 = pneg %p48
        %p166 = pneg %p72
        %p167 = pneg %p69
        %p168 = pneg %p98
        %p169 = pneg %p95
        %s170 = smul.u32 64, %s20
        %p171 = scmp.lt.s32.totalorder %s170, 127
        %s172 = scalar_select %p171, %s170, 127
        %s173 = smul.addr %s172, 8
        %s174 = scalar_lea.vmem %s2, %s173
        %s175 = smul.u32 64, %s20
        %s176 = smul.u32 64, %s20
        %p177 = scmp.lt.s32.totalorder %s176, 127
        %s178 = scalar_select %p177, %s176, 127
        %s179 = smul.addr %s178, 8
        %s180 = scalar_lea.vmem %s2, %s179
        %s181 = smul.u32 64, %s20
        %p182 = scmp.eq.s32.totalorder %s21, 0
        // Predicated region
        $region33: #{tpu_custom_call.1} parent=27 // pred_check
          %p183 = pneg %p182
        $region34: #{tpu_custom_call.1} parent=27 // pred_check_branch
          %185 = sbr.rel (%p183) target = $region36
        $region35: #{tpu_custom_call.1} parent=27 // pred_region
          %vm186 = vcmask 130048
          %187 = vst.msk [vmem:[%s180] sm:$0xff] %vm186, 0.0
          %188 = vst.msk [vmem:[%s180 + $0x8] sm:$0xff] %vm186, 0.0
          %189 = vst.msk [vmem:[%s180 + $0x10] sm:$0xff] %vm186, 0.0
          %190 = vst.msk [vmem:[%s180 + $0x18] sm:$0xff] %vm186, 0.0
          %191 = vst.msk [vmem:[%s180 + $0x20] sm:$0xff] %vm186, 0.0
          %192 = vst.msk [vmem:[%s180 + $0x28] sm:$0xff] %vm186, 0.0
          %193 = vst.msk [vmem:[%s180 + $0x30] sm:$0xff] %vm186, 0.0
          %194 = vst.msk [vmem:[%s180 + $0x38] sm:$0xff] %vm186, 0.0
          %195 = vst.msk [vmem:[%s180 + $0x40] sm:$0xff] %vm186, 0.0
          %196 = vst.msk [vmem:[%s180 + $0x48] sm:$0xff] %vm186, 0.0
          %197 = vst.msk [vmem:[%s180 + $0x50] sm:$0xff] %vm186, 0.0
          %198 = vst.msk [vmem:[%s180 + $0x58] sm:$0xff] %vm186, 0.0
          %199 = vst.msk [vmem:[%s180 + $0x60] sm:$0xff] %vm186, 0.0
          %200 = vst.msk [vmem:[%s180 + $0x68] sm:$0xff] %vm186, 0.0
          %201 = vst.msk [vmem:[%s180 + $0x70] sm:$0xff] %vm186, 0.0
          %202 = vst.msk [vmem:[%s180 + $0x78] sm:$0xff] %vm186, 0.0
          %203 = vst.msk [vmem:[%s180 + $0x80] sm:$0xff] %vm186, 0.0
          %204 = vst.msk [vmem:[%s180 + $0x88] sm:$0xff] %vm186, 0.0
          %205 = vst.msk [vmem:[%s180 + $0x90] sm:$0xff] %vm186, 0.0
          %206 = vst.msk [vmem:[%s180 + $0x98] sm:$0xff] %vm186, 0.0
          %207 = vst.msk [vmem:[%s180 + $0xa0] sm:$0xff] %vm186, 0.0
          %208 = vst.msk [vmem:[%s180 + $0xa8] sm:$0xff] %vm186, 0.0
          %209 = vst.msk [vmem:[%s180 + $0xb0] sm:$0xff] %vm186, 0.0
          %210 = vst.msk [vmem:[%s180 + $0xb8] sm:$0xff] %vm186, 0.0
          %211 = vst.msk [vmem:[%s180 + $0xc0] sm:$0xff] %vm186, 0.0
          %212 = vst.msk [vmem:[%s180 + $0xc8] sm:$0xff] %vm186, 0.0
          %213 = vst.msk [vmem:[%s180 + $0xd0] sm:$0xff] %vm186, 0.0
          %214 = vst.msk [vmem:[%s180 + $0xd8] sm:$0xff] %vm186, 0.0
          %215 = vst.msk [vmem:[%s180 + $0xe0] sm:$0xff] %vm186, 0.0
          %216 = vst.msk [vmem:[%s180 + $0xe8] sm:$0xff] %vm186, 0.0
          %217 = vst.msk [vmem:[%s180 + $0xf0] sm:$0xff] %vm186, 0.0
          %218 = vst.msk [vmem:[%s180 + $0xf8] sm:$0xff] %vm186, 0.0
          %219 = vst.msk [vmem:[%s180 + $0x100] sm:$0xff] %vm186, 0.0
          %220 = vst.msk [vmem:[%s180 + $0x108] sm:$0xff] %vm186, 0.0
          %221 = vst.msk [vmem:[%s180 + $0x110] sm:$0xff] %vm186, 0.0
          %222 = vst.msk [vmem:[%s180 + $0x118] sm:$0xff] %vm186, 0.0
          %223 = vst.msk [vmem:[%s180 + $0x120] sm:$0xff] %vm186, 0.0
          %224 = vst.msk [vmem:[%s180 + $0x128] sm:$0xff] %vm186, 0.0
          %225 = vst.msk [vmem:[%s180 + $0x130] sm:$0xff] %vm186, 0.0
          %226 = vst.msk [vmem:[%s180 + $0x138] sm:$0xff] %vm186, 0.0
          %227 = vst.msk [vmem:[%s180 + $0x140] sm:$0xff] %vm186, 0.0
          %228 = vst.msk [vmem:[%s180 + $0x148] sm:$0xff] %vm186, 0.0
          %229 = vst.msk [vmem:[%s180 + $0x150] sm:$0xff] %vm186, 0.0
          %230 = vst.msk [vmem:[%s180 + $0x158] sm:$0xff] %vm186, 0.0
          %231 = vst.msk [vmem:[%s180 + $0x160] sm:$0xff] %vm186, 0.0
          %232 = vst.msk [vmem:[%s180 + $0x168] sm:$0xff] %vm186, 0.0
          %233 = vst.msk [vmem:[%s180 + $0x170] sm:$0xff] %vm186, 0.0
          %234 = vst.msk [vmem:[%s180 + $0x178] sm:$0xff] %vm186, 0.0
          %235 = vst.msk [vmem:[%s180 + $0x180] sm:$0xff] %vm186, 0.0
          %236 = vst.msk [vmem:[%s180 + $0x188] sm:$0xff] %vm186, 0.0
          %237 = vst.msk [vmem:[%s180 + $0x190] sm:$0xff] %vm186, 0.0
          %238 = vst.msk [vmem:[%s180 + $0x198] sm:$0xff] %vm186, 0.0
          %239 = vst.msk [vmem:[%s180 + $0x1a0] sm:$0xff] %vm186, 0.0
          %240 = vst.msk [vmem:[%s180 + $0x1a8] sm:$0xff] %vm186, 0.0
          %241 = vst.msk [vmem:[%s180 + $0x1b0] sm:$0xff] %vm186, 0.0
          %242 = vst.msk [vmem:[%s180 + $0x1b8] sm:$0xff] %vm186, 0.0
          %243 = vst.msk [vmem:[%s180 + $0x1c0] sm:$0xff] %vm186, 0.0
          %244 = vst.msk [vmem:[%s180 + $0x1c8] sm:$0xff] %vm186, 0.0
          %245 = vst.msk [vmem:[%s180 + $0x1d0] sm:$0xff] %vm186, 0.0
          %246 = vst.msk [vmem:[%s180 + $0x1d8] sm:$0xff] %vm186, 0.0
          %247 = vst.msk [vmem:[%s180 + $0x1e0] sm:$0xff] %vm186, 0.0
          %248 = vst.msk [vmem:[%s180 + $0x1e8] sm:$0xff] %vm186, 0.0
          %249 = vst.msk [vmem:[%s180 + $0x1f0] sm:$0xff] %vm186, 0.0
          %250 = vst.msk [vmem:[%s180 + $0x1f8] sm:$0xff] %vm186, 0.0
        $region36: #{tpu_custom_call.1} parent=27 // pred_fallthru
          _
        %s251 = smul.u32 %s21, 128
        %v252 = vld [vmem:[%s180] sm:$0xff]
        %v253 = vld [vmem:[%s180 + $0x8] sm:$0xff]
        %v254 = vld [vmem:[%s180 + $0x10] sm:$0xff]
        %v255 = vld [vmem:[%s180 + $0x18] sm:$0xff]
        %v256 = vld [vmem:[%s180 + $0x20] sm:$0xff]
        %v257 = vld [vmem:[%s180 + $0x28] sm:$0xff]
        %v258 = vld [vmem:[%s180 + $0x30] sm:$0xff]
        %v259 = vld [vmem:[%s180 + $0x38] sm:$0xff]
        %v260 = vld [vmem:[%s180 + $0x40] sm:$0xff]
        %v261 = vld [vmem:[%s180 + $0x48] sm:$0xff]
        %v262 = vld [vmem:[%s180 + $0x50] sm:$0xff]
        %v263 = vld [vmem:[%s180 + $0x58] sm:$0xff]
        %v264 = vld [vmem:[%s180 + $0x60] sm:$0xff]
        %v265 = vld [vmem:[%s180 + $0x68] sm:$0xff]
        %v266 = vld [vmem:[%s180 + $0x70] sm:$0xff]
        %v267 = vld [vmem:[%s180 + $0x78] sm:$0xff]
        %v268 = vld [vmem:[%s180 + $0x80] sm:$0xff]
        %v269 = vld [vmem:[%s180 + $0x88] sm:$0xff]
        %v270 = vld [vmem:[%s180 + $0x90] sm:$0xff]
        %v271 = vld [vmem:[%s180 + $0x98] sm:$0xff]
        %v272 = vld [vmem:[%s180 + $0xa0] sm:$0xff]
        %v273 = vld [vmem:[%s180 + $0xa8] sm:$0xff]
        %v274 = vld [vmem:[%s180 + $0xb0] sm:$0xff]
        %v275 = vld [vmem:[%s180 + $0xb8] sm:$0xff]
        %v276 = vld [vmem:[%s180 + $0xc0] sm:$0xff]
        %v277 = vld [vmem:[%s180 + $0xc8] sm:$0xff]
        %v278 = vld [vmem:[%s180 + $0xd0] sm:$0xff]
        %v279 = vld [vmem:[%s180 + $0xd8] sm:$0xff]
        %v280 = vld [vmem:[%s180 + $0xe0] sm:$0xff]
        %v281 = vld [vmem:[%s180 + $0xe8] sm:$0xff]
        %v282 = vld [vmem:[%s180 + $0xf0] sm:$0xff]
        %v283 = vld [vmem:[%s180 + $0xf8] sm:$0xff]
        %v284 = vld [vmem:[%s180 + $0x100] sm:$0xff]
        %v285 = vld [vmem:[%s180 + $0x108] sm:$0xff]
        %v286 = vld [vmem:[%s180 + $0x110] sm:$0xff]
        %v287 = vld [vmem:[%s180 + $0x118] sm:$0xff]
        %v288 = vld [vmem:[%s180 + $0x120] sm:$0xff]
        %v289 = vld [vmem:[%s180 + $0x128] sm:$0xff]
        %v290 = vld [vmem:[%s180 + $0x130] sm:$0xff]
        %v291 = vld [vmem:[%s180 + $0x138] sm:$0xff]
        %v292 = vld [vmem:[%s180 + $0x140] sm:$0xff]
        %v293 = vld [vmem:[%s180 + $0x148] sm:$0xff]
        %v294 = vld [vmem:[%s180 + $0x150] sm:$0xff]
        %v295 = vld [vmem:[%s180 + $0x158] sm:$0xff]
        %v296 = vld [vmem:[%s180 + $0x160] sm:$0xff]
        %v297 = vld [vmem:[%s180 + $0x168] sm:$0xff]
        %v298 = vld [vmem:[%s180 + $0x170] sm:$0xff]
        %v299 = vld [vmem:[%s180 + $0x178] sm:$0xff]
        %v300 = vld [vmem:[%s180 + $0x180] sm:$0xff]
        %v301 = vld [vmem:[%s180 + $0x188] sm:$0xff]
        %v302 = vld [vmem:[%s180 + $0x190] sm:$0xff]
        %v303 = vld [vmem:[%s180 + $0x198] sm:$0xff]
        %v304 = vld [vmem:[%s180 + $0x1a0] sm:$0xff]
        %v305 = vld [vmem:[%s180 + $0x1a8] sm:$0xff]
        %v306 = vld [vmem:[%s180 + $0x1b0] sm:$0xff]
        %v307 = vld [vmem:[%s180 + $0x1b8] sm:$0xff]
        %v308 = vld [vmem:[%s180 + $0x1c0] sm:$0xff]
        %v309 = vld [vmem:[%s180 + $0x1c8] sm:$0xff]
        %v310 = vld [vmem:[%s180 + $0x1d0] sm:$0xff]
        %v311 = vld [vmem:[%s180 + $0x1d8] sm:$0xff]
        %v312 = vld [vmem:[%s180 + $0x1e0] sm:$0xff]
        %v313 = vld [vmem:[%s180 + $0x1e8] sm:$0xff]
        %v314 = vld [vmem:[%s180 + $0x1f0] sm:$0xff]
        %v315 = vld [vmem:[%s180 + $0x1f8] sm:$0xff]
        %v316 = vld [vmem:[%s154] sm:$0xff]
        %v317 = vld [vmem:[%s154 + $0x8] sm:$0xff]
        %v318 = vld [vmem:[%s154 + $0x10] sm:$0xff]
        %v319 = vld [vmem:[%s154 + $0x18] sm:$0xff]
        %v320 = vld [vmem:[%s154 + $0x20] sm:$0xff]
        %v321 = vld [vmem:[%s154 + $0x28] sm:$0xff]
        %v322 = vld [vmem:[%s154 + $0x30] sm:$0xff]
        %v323 = vld [vmem:[%s154 + $0x38] sm:$0xff]
        %v324 = vld [vmem:[%s154 + $0x40] sm:$0xff]
        %v325 = vld [vmem:[%s154 + $0x48] sm:$0xff]
        %v326 = vld [vmem:[%s154 + $0x50] sm:$0xff]
        %v327 = vld [vmem:[%s154 + $0x58] sm:$0xff]
        %v328 = vld [vmem:[%s154 + $0x60] sm:$0xff]
        %v329 = vld [vmem:[%s154 + $0x68] sm:$0xff]
        %v330 = vld [vmem:[%s154 + $0x70] sm:$0xff]
        %v331 = vld [vmem:[%s154 + $0x78] sm:$0xff]
        %v332 = vld [vmem:[%s154 + $0x80] sm:$0xff]
        %v333 = vld [vmem:[%s154 + $0x88] sm:$0xff]
        %v334 = vld [vmem:[%s154 + $0x90] sm:$0xff]
        %v335 = vld [vmem:[%s154 + $0x98] sm:$0xff]
        %v336 = vld [vmem:[%s154 + $0xa0] sm:$0xff]
        %v337 = vld [vmem:[%s154 + $0xa8] sm:$0xff]
        %v338 = vld [vmem:[%s154 + $0xb0] sm:$0xff]
        %v339 = vld [vmem:[%s154 + $0xb8] sm:$0xff]
        %v340 = vld [vmem:[%s154 + $0xc0] sm:$0xff]
        %v341 = vld [vmem:[%s154 + $0xc8] sm:$0xff]
        %v342 = vld [vmem:[%s154 + $0xd0] sm:$0xff]
        %v343 = vld [vmem:[%s154 + $0xd8] sm:$0xff]
        %v344 = vld [vmem:[%s154 + $0xe0] sm:$0xff]
        %v345 = vld [vmem:[%s154 + $0xe8] sm:$0xff]
        %v346 = vld [vmem:[%s154 + $0xf0] sm:$0xff]
        %v347 = vld [vmem:[%s154 + $0xf8] sm:$0xff]
        %v348 = vld [vmem:[%s154 + $0x100] sm:$0xff]
        %v349 = vld [vmem:[%s154 + $0x108] sm:$0xff]
        %v350 = vld [vmem:[%s154 + $0x110] sm:$0xff]
        %v351 = vld [vmem:[%s154 + $0x118] sm:$0xff]
        %v352 = vld [vmem:[%s154 + $0x120] sm:$0xff]
        %v353 = vld [vmem:[%s154 + $0x128] sm:$0xff]
        %v354 = vld [vmem:[%s154 + $0x130] sm:$0xff]
        %v355 = vld [vmem:[%s154 + $0x138] sm:$0xff]
        %v356 = vld [vmem:[%s154 + $0x140] sm:$0xff]
        %v357 = vld [vmem:[%s154 + $0x148] sm:$0xff]
        %v358 = vld [vmem:[%s154 + $0x150] sm:$0xff]
        %v359 = vld [vmem:[%s154 + $0x158] sm:$0xff]
        %v360 = vld [vmem:[%s154 + $0x160] sm:$0xff]
        %v361 = vld [vmem:[%s154 + $0x168] sm:$0xff]
        %v362 = vld [vmem:[%s154 + $0x170] sm:$0xff]
        %v363 = vld [vmem:[%s154 + $0x178] sm:$0xff]
        %v364 = vld [vmem:[%s154 + $0x180] sm:$0xff]
        %v365 = vld [vmem:[%s154 + $0x188] sm:$0xff]
        %v366 = vld [vmem:[%s154 + $0x190] sm:$0xff]
        %v367 = vld [vmem:[%s154 + $0x198] sm:$0xff]
        %v368 = vld [vmem:[%s154 + $0x1a0] sm:$0xff]
        %v369 = vld [vmem:[%s154 + $0x1a8] sm:$0xff]
        %v370 = vld [vmem:[%s154 + $0x1b0] sm:$0xff]
        %v371 = vld [vmem:[%s154 + $0x1b8] sm:$0xff]
        %v372 = vld [vmem:[%s154 + $0x1c0] sm:$0xff]
        %v373 = vld [vmem:[%s154 + $0x1c8] sm:$0xff]
        %v374 = vld [vmem:[%s154 + $0x1d0] sm:$0xff]
        %v375 = vld [vmem:[%s154 + $0x1d8] sm:$0xff]
        %v376 = vld [vmem:[%s154 + $0x1e0] sm:$0xff]
        %v377 = vld [vmem:[%s154 + $0x1e8] sm:$0xff]
        %v378 = vld [vmem:[%s154 + $0x1f0] sm:$0xff]
        %v379 = vld [vmem:[%s154 + $0x1f8] sm:$0xff]
        %s380 = scalar_lea.vmem %s1, %s251
        %v381 = vld [vmem:[%s380] sm:$0xff]
        %v382 = vld [vmem:[%s380 + $0x8] sm:$0xff]
        %v383 = vld [vmem:[%s380 + $0x10] sm:$0xff]
        %v384 = vld [vmem:[%s380 + $0x18] sm:$0xff]
        %v385 = vld [vmem:[%s380 + $0x20] sm:$0xff]
        %v386 = vld [vmem:[%s380 + $0x28] sm:$0xff]
        %v387 = vld [vmem:[%s380 + $0x30] sm:$0xff]
        %v388 = vld [vmem:[%s380 + $0x38] sm:$0xff]
        %v389 = vld [vmem:[%s380 + $0x40] sm:$0xff]
        %v390 = vld [vmem:[%s380 + $0x48] sm:$0xff]
        %v391 = vld [vmem:[%s380 + $0x50] sm:$0xff]
        %v392 = vld [vmem:[%s380 + $0x58] sm:$0xff]
        %v393 = vld [vmem:[%s380 + $0x60] sm:$0xff]
        %v394 = vld [vmem:[%s380 + $0x68] sm:$0xff]
        %v395 = vld [vmem:[%s380 + $0x70] sm:$0xff]
        %v396 = vld [vmem:[%s380 + $0x78] sm:$0xff]
        %397 = vmatprep.subr.mxu0 0.0
        %398 = vmatpush1.msra.mxu0 %v381
        %399 = vmatprep.subr.mxu0 0.0
        %400 = vmatpush1.msra.mxu0 %v382
        %401 = vmatprep.subr.mxu0 0.0
        %402 = vmatpush1.msra.mxu0 %v383
        %403 = vmatprep.subr.mxu0 0.0
        %404 = vmatpush1.msra.mxu0 %v384
        %405 = vmatprep.subr.mxu0 0.0
        %406 = vmatpush1.msra.mxu0 %v385
        %407 = vmatprep.subr.mxu0 0.0
        %408 = vmatpush1.msra.mxu0 %v386
        %409 = vmatprep.subr.mxu0 0.0
        %410 = vmatpush1.msra.mxu0 %v387
        %411 = vmatprep.subr.mxu0 0.0
        %412 = vmatpush1.msra.mxu0 %v388
        %413 = vmatprep.subr.mxu0 0.0
        %414 = vmatpush1.msra.mxu0 %v389
        %415 = vmatprep.subr.mxu0 0.0
        %416 = vmatpush1.msra.mxu0 %v390
        %417 = vmatprep.subr.mxu0 0.0
        %418 = vmatpush1.msra.mxu0 %v391
        %419 = vmatprep.subr.mxu0 0.0
        %420 = vmatpush1.msra.mxu0 %v392
        %421 = vmatprep.subr.mxu0 0.0
        %422 = vmatpush1.msra.mxu0 %v393
        %423 = vmatprep.subr.mxu0 0.0
        %424 = vmatpush1.msra.mxu0 %v394
        %425 = vmatprep.subr.mxu0 0.0
        %426 = vmatpush1.msra.mxu0 %v395
        %427 = vmatprep.subr.mxu0 0.0
        %428 = vmatpush1.msra.mxu0 %v396
        %429 = vmatprep.subr.mxu0 0.0
        %430 = vmatpush1.msra.mxu0 0.0
        %431 = vmatprep.subr.mxu0 0.0
        %432 = vmatpush1.msra.mxu0 0.0
        %433 = vmatprep.subr.mxu0 0.0
        %434 = vmatpush1.msra.mxu0 0.0
        %435 = vmatprep.subr.mxu0 0.0
        %436 = vmatpush1.msra.mxu0 0.0
        %437 = vmatprep.subr.mxu0 0.0
        %438 = vmatpush1.msra.mxu0 0.0
        %439 = vmatprep.subr.mxu0 0.0
        %440 = vmatpush1.msra.mxu0 0.0
        %441 = vmatprep.subr.mxu0 0.0
        %442 = vmatpush1.msra.mxu0 0.0
        %443 = vmatprep.subr.mxu0 0.0
        %444 = vmatpush1.msra.mxu0 0.0
        %445 = vmatprep.subr.mxu0 0.0
        %446 = vmatpush1.msra.mxu0 0.0
        %447 = vmatprep.subr.mxu0 0.0
        %448 = vmatpush1.msra.mxu0 0.0
        %449 = vmatprep.subr.mxu0 0.0
        %450 = vmatpush1.msra.mxu0 0.0
        %451 = vmatprep.subr.mxu0 0.0
        %452 = vmatpush1.msra.mxu0 0.0
        %453 = vmatprep.subr.mxu0 0.0
        %454 = vmatpush1.msra.mxu0 0.0
        %455 = vmatprep.subr.mxu0 0.0
        %456 = vmatpush1.msra.mxu0 0.0
        %457 = vmatprep.subr.mxu0 0.0
        %458 = vmatpush1.msra.mxu0 0.0
        %459 = vmatprep.subr.mxu0 0.0
        %460 = vmatpush1.msra.mxu0 0.0
        %461 = vmatprep.mubr.f32.mxu0 0.0
        %462 = vmatmul.mubr.f32.gmra.mrb[0].mxu0 %v316
        %v463 = vpop.f32.mrb[0].mxu0
        %v464 = vadd.f32 0.0, %v463
        %v465 = vpop.f32.mrb[0].mxu0
        %466 = vmatprep.mubr.f32.mxu0 0.0
        %467 = vmatmul.mubr.f32.gmra.mrb[0].mxu0 %v317
        %v468 = vpop.f32.mrb[0].mxu0
        %v469 = vadd.f32 0.0, %v468
        %v470 = vpop.f32.mrb[0].mxu0
        %471 = vmatprep.mubr.f32.mxu0 0.0
        %472 = vmatmul.mubr.f32.gmra.mrb[0].mxu0 %v318
        %v473 = vpop.f32.mrb[0].mxu0
        %v474 = vadd.f32 0.0, %v473
        %v475 = vpop.f32.mrb[0].mxu0
        %476 = vmatprep.mubr.f32.mxu0 0.0
        %477 = vmatmul.mubr.f32.gmra.mrb[0].mxu0 %v319
        %v478 = vpop.f32.mrb[0].mxu0
        %v479 = vadd.f32 0.0, %v478
        %v480 = vpop.f32.mrb[0].mxu0
        %481 = vmatprep.mubr.f32.mxu0 0.0
        %482 = vmatmul.mubr.f32.gmra.mrb[0].mxu0 %v320
        %v483 = vpop.f32.mrb[0].mxu0
        %v484 = vadd.f32 0.0, %v483
        %v485 = vpop.f32.mrb[0].mxu0
        %486 = vmatprep.mubr.f32.mxu0 0.0
        %487 = vmatmul.mubr.f32.gmra.mrb[0].mxu0 %v321
        %v488 = vpop.f32.mrb[0].mxu0
        %v489 = vadd.f32 0.0, %v488
        %v490 = vpop.f32.mrb[0].mxu0
        %491 = vmatprep.mubr.f32.mxu0 0.0
        %492 = vmatmul.mubr.f32.gmra.mrb[0].mxu0 %v322
        %v493 = vpop.f32.mrb[0].mxu0
        %v494 = vadd.f32 0.0, %v493
        %v495 = vpop.f32.mrb[0].mxu0
        %496 = vmatprep.mubr.f32.mxu0 0.0
        %497 = vmatmul.mubr.f32.gmra.mrb[0].mxu0 %v323
        %v498 = vpop.f32.mrb[0].mxu0
        %v499 = vadd.f32 0.0, %v498
        %v500 = vpop.f32.mrb[0].mxu0
        %501 = vmatprep.mubr.f32.mxu0 0.0
        %502 = vmatmul.mubr.f32.gmra.mrb[0].mxu0 %v324
        %v503 = vpop.f32.mrb[0].mxu0
        %v504 = vadd.f32 0.0, %v503
        %v505 = vpop.f32.mrb[0].mxu0
        %506 = vmatprep.mubr.f32.mxu0 0.0
        %507 = vmatmul.mubr.f32.gmra.mrb[0].mxu0 %v325
        %v508 = vpop.f32.mrb[0].mxu0
        %v509 = vadd.f32 0.0, %v508
        %v510 = vpop.f32.mrb[0].mxu0
        %511 = vmatprep.mubr.f32.mxu0 0.0
        %512 = vmatmul.mubr.f32.gmra.mrb[0].mxu0 %v326
        %v513 = vpop.f32.mrb[0].mxu0
        %v514 = vadd.f32 0.0, %v513
        %v515 = vpop.f32.mrb[0].mxu0
        %516 = vmatprep.mubr.f32.mxu0 0.0
        %517 = vmatmul.mubr.f32.gmra.mrb[0].mxu0 %v327
        %v518 = vpop.f32.mrb[0].mxu0
        %v519 = vadd.f32 0.0, %v518
        %v520 = vpop.f32.mrb[0].mxu0
        %521 = vmatprep.mubr.f32.mxu0 0.0
        %522 = vmatmul.mubr.f32.gmra.mrb[0].mxu0 %v328
        %v523 = vpop.f32.mrb[0].mxu0
        %v524 = vadd.f32 0.0, %v523
        %v525 = vpop.f32.mrb[0].mxu0
        %526 = vmatprep.mubr.f32.mxu0 0.0
        %527 = vmatmul.mubr.f32.gmra.mrb[0].mxu0 %v329
        %v528 = vpop.f32.mrb[0].mxu0
        %v529 = vadd.f32 0.0, %v528
        %v530 = vpop.f32.mrb[0].mxu0
        %531 = vmatprep.mubr.f32.mxu0 0.0
        %532 = vmatmul.mubr.f32.gmra.mrb[0].mxu0 %v330
        %v533 = vpop.f32.mrb[0].mxu0
        %v534 = vadd.f32 0.0, %v533
        %v535 = vpop.f32.mrb[0].mxu0
        %536 = vmatprep.mubr.f32.mxu0 0.0
        %537 = vmatmul.mubr.f32.gmra.mrb[0].mxu0 %v331
        %v538 = vpop.f32.mrb[0].mxu0
        %v539 = vadd.f32 0.0, %v538
        %v540 = vpop.f32.mrb[0].mxu0
        %541 = vmatprep.mubr.f32.mxu0 0.0
        %542 = vmatmul.mubr.f32.gmra.mrb[0].mxu0 %v332
        %v543 = vpop.f32.mrb[0].mxu0
        %v544 = vadd.f32 0.0, %v543
        %v545 = vpop.f32.mrb[0].mxu0
        %546 = vmatprep.mubr.f32.mxu0 0.0
        %547 = vmatmul.mubr.f32.gmra.mrb[0].mxu0 %v333
        %v548 = vpop.f32.mrb[0].mxu0
        %v549 = vadd.f32 0.0, %v548
        %v550 = vpop.f32.mrb[0].mxu0
        %551 = vmatprep.mubr.f32.mxu0 0.0
        %552 = vmatmul.mubr.f32.gmra.mrb[0].mxu0 %v334
        %v553 = vpop.f32.mrb[0].mxu0
        %v554 = vadd.f32 0.0, %v553
        %v555 = vpop.f32.mrb[0].mxu0
        %556 = vmatprep.mubr.f32.mxu0 0.0
        %557 = vmatmul.mubr.f32.gmra.mrb[0].mxu0 %v335
        %v558 = vpop.f32.mrb[0].mxu0
        %v559 = vadd.f32 0.0, %v558
        %v560 = vpop.f32.mrb[0].mxu0
        %561 = vmatprep.mubr.f32.mxu0 0.0
        %562 = vmatmul.mubr.f32.gmra.mrb[0].mxu0 %v336
        %v563 = vpop.f32.mrb[0].mxu0
        %v564 = vadd.f32 0.0, %v563
        %v565 = vpop.f32.mrb[0].mxu0
        %566 = vmatprep.mubr.f32.mxu0 0.0
        %567 = vmatmul.mubr.f32.gmra.mrb[0].mxu0 %v337
        %v568 = vpop.f32.mrb[0].mxu0
        %v569 = vadd.f32 0.0, %v568
        %v570 = vpop.f32.mrb[0].mxu0
        %571 = vmatprep.mubr.f32.mxu0 0.0
        %572 = vmatmul.mubr.f32.gmra.mrb[0].mxu0 %v338
        %v573 = vpop.f32.mrb[0].mxu0
        %v574 = vadd.f32 0.0, %v573
        %v575 = vpop.f32.mrb[0].mxu0
        %576 = vmatprep.mubr.f32.mxu0 0.0
        %577 = vmatmul.mubr.f32.gmra.mrb[0].mxu0 %v339
        %v578 = vpop.f32.mrb[0].mxu0
        %v579 = vadd.f32 0.0, %v578
        %v580 = vpop.f32.mrb[0].mxu0
        %581 = vmatprep.mubr.f32.mxu0 0.0
        %582 = vmatmul.mubr.f32.gmra.mrb[0].mxu0 %v340
        %v583 = vpop.f32.mrb[0].mxu0
        %v584 = vadd.f32 0.0, %v583
        %v585 = vpop.f32.mrb[0].mxu0
        %586 = vmatprep.mubr.f32.mxu0 0.0
        %587 = vmatmul.mubr.f32.gmra.mrb[0].mxu0 %v341
        %v588 = vpop.f32.mrb[0].mxu0
        %v589 = vadd.f32 0.0, %v588
        %v590 = vpop.f32.mrb[0].mxu0
        %591 = vmatprep.mubr.f32.mxu0 0.0
        %592 = vmatmul.mubr.f32.gmra.mrb[0].mxu0 %v342
        %v593 = vpop.f32.mrb[0].mxu0
        %v594 = vadd.f32 0.0, %v593
        %v595 = vpop.f32.mrb[0].mxu0
        %596 = vmatprep.mubr.f32.mxu0 0.0
        %597 = vmatmul.mubr.f32.gmra.mrb[0].mxu0 %v343
        %v598 = vpop.f32.mrb[0].mxu0
        %v599 = vadd.f32 0.0, %v598
        %v600 = vpop.f32.mrb[0].mxu0
        %601 = vmatprep.mubr.f32.mxu0 0.0
        %602 = vmatmul.mubr.f32.gmra.mrb[0].mxu0 %v344
        %v603 = vpop.f32.mrb[0].mxu0
        %v604 = vadd.f32 0.0, %v603
        %v605 = vpop.f32.mrb[0].mxu0
        %606 = vmatprep.mubr.f32.mxu0 0.0
        %607 = vmatmul.mubr.f32.gmra.mrb[0].mxu0 %v345
        %v608 = vpop.f32.mrb[0].mxu0
        %v609 = vadd.f32 0.0, %v608
        %v610 = vpop.f32.mrb[0].mxu0
        %611 = vmatprep.mubr.f32.mxu0 0.0
        %612 = vmatmul.mubr.f32.gmra.mrb[0].mxu0 %v346
        %v613 = vpop.f32.mrb[0].mxu0
        %v614 = vadd.f32 0.0, %v613
        %v615 = vpop.f32.mrb[0].mxu0
        %616 = vmatprep.mubr.f32.mxu0 0.0
        %617 = vmatmul.mubr.f32.gmra.mrb[0].mxu0 %v347
        %v618 = vpop.f32.mrb[0].mxu0
        %v619 = vadd.f32 0.0, %v618
        %v620 = vpop.f32.mrb[0].mxu0
        %621 = vmatprep.mubr.f32.mxu0 0.0
        %622 = vmatmul.mubr.f32.gmra.mrb[0].mxu0 %v348
        %v623 = vpop.f32.mrb[0].mxu0
        %v624 = vadd.f32 0.0, %v623
        %v625 = vpop.f32.mrb[0].mxu0
        %626 = vmatprep.mubr.f32.mxu0 0.0
        %627 = vmatmul.mubr.f32.gmra.mrb[0].mxu0 %v349
        %v628 = vpop.f32.mrb[0].mxu0
        %v629 = vadd.f32 0.0, %v628
        %v630 = vpop.f32.mrb[0].mxu0
        %631 = vmatprep.mubr.f32.mxu0 0.0
        %632 = vmatmul.mubr.f32.gmra.mrb[0].mxu0 %v350
        %v633 = vpop.f32.mrb[0].mxu0
        %v634 = vadd.f32 0.0, %v633
        %v635 = vpop.f32.mrb[0].mxu0
        %636 = vmatprep.mubr.f32.mxu0 0.0
        %637 = vmatmul.mubr.f32.gmra.mrb[0].mxu0 %v351
        %v638 = vpop.f32.mrb[0].mxu0
        %v639 = vadd.f32 0.0, %v638
        %v640 = vpop.f32.mrb[0].mxu0
        %641 = vmatprep.mubr.f32.mxu0 0.0
        %642 = vmatmul.mubr.f32.gmra.mrb[0].mxu0 %v352
        %v643 = vpop.f32.mrb[0].mxu0
        %v644 = vadd.f32 0.0, %v643
        %v645 = vpop.f32.mrb[0].mxu0
        %646 = vmatprep.mubr.f32.mxu0 0.0
        %647 = vmatmul.mubr.f32.gmra.mrb[0].mxu0 %v353
        %v648 = vpop.f32.mrb[0].mxu0
        %v649 = vadd.f32 0.0, %v648
        %v650 = vpop.f32.mrb[0].mxu0
        %651 = vmatprep.mubr.f32.mxu0 0.0
        %652 = vmatmul.mubr.f32.gmra.mrb[0].mxu0 %v354
        %v653 = vpop.f32.mrb[0].mxu0
        %v654 = vadd.f32 0.0, %v653
        %v655 = vpop.f32.mrb[0].mxu0
        %656 = vmatprep.mubr.f32.mxu0 0.0
        %657 = vmatmul.mubr.f32.gmra.mrb[0].mxu0 %v355
        %v658 = vpop.f32.mrb[0].mxu0
        %v659 = vadd.f32 0.0, %v658
        %v660 = vpop.f32.mrb[0].mxu0
        %661 = vmatprep.mubr.f32.mxu0 0.0
        %662 = vmatmul.mubr.f32.gmra.mrb[0].mxu0 %v356
        %v663 = vpop.f32.mrb[0].mxu0
        %v664 = vadd.f32 0.0, %v663
        %v665 = vpop.f32.mrb[0].mxu0
        %666 = vmatprep.mubr.f32.mxu0 0.0
        %667 = vmatmul.mubr.f32.gmra.mrb[0].mxu0 %v357
        %v668 = vpop.f32.mrb[0].mxu0
        %v669 = vadd.f32 0.0, %v668
        %v670 = vpop.f32.mrb[0].mxu0
        %671 = vmatprep.mubr.f32.mxu0 0.0
        %672 = vmatmul.mubr.f32.gmra.mrb[0].mxu0 %v358
        %v673 = vpop.f32.mrb[0].mxu0
        %v674 = vadd.f32 0.0, %v673
        %v675 = vpop.f32.mrb[0].mxu0
        %676 = vmatprep.mubr.f32.mxu0 0.0
        %677 = vmatmul.mubr.f32.gmra.mrb[0].mxu0 %v359
        %v678 = vpop.f32.mrb[0].mxu0
        %v679 = vadd.f32 0.0, %v678
        %v680 = vpop.f32.mrb[0].mxu0
        %681 = vmatprep.mubr.f32.mxu0 0.0
        %682 = vmatmul.mubr.f32.gmra.mrb[0].mxu0 %v360
        %v683 = vpop.f32.mrb[0].mxu0
        %v684 = vadd.f32 0.0, %v683
        %v685 = vpop.f32.mrb[0].mxu0
        %686 = vmatprep.mubr.f32.mxu0 0.0
        %687 = vmatmul.mubr.f32.gmra.mrb[0].mxu0 %v361
        %v688 = vpop.f32.mrb[0].mxu0
        %v689 = vadd.f32 0.0, %v688
        %v690 = vpop.f32.mrb[0].mxu0
        %691 = vmatprep.mubr.f32.mxu0 0.0
        %692 = vmatmul.mubr.f32.gmra.mrb[0].mxu0 %v362
        %v693 = vpop.f32.mrb[0].mxu0
        %v694 = vadd.f32 0.0, %v693
        %v695 = vpop.f32.mrb[0].mxu0
        %696 = vmatprep.mubr.f32.mxu0 0.0
        %697 = vmatmul.mubr.f32.gmra.mrb[0].mxu0 %v363
        %v698 = vpop.f32.mrb[0].mxu0
        %v699 = vadd.f32 0.0, %v698
        %v700 = vpop.f32.mrb[0].mxu0
        %701 = vmatprep.mubr.f32.mxu0 0.0
        %702 = vmatmul.mubr.f32.gmra.mrb[0].mxu0 %v364
        %v703 = vpop.f32.mrb[0].mxu0
        %v704 = vadd.f32 0.0, %v703
        %v705 = vpop.f32.mrb[0].mxu0
        %706 = vmatprep.mubr.f32.mxu0 0.0
        %707 = vmatmul.mubr.f32.gmra.mrb[0].mxu0 %v365
        %v708 = vpop.f32.mrb[0].mxu0
        %v709 = vadd.f32 0.0, %v708
        %v710 = vpop.f32.mrb[0].mxu0
        %711 = vmatprep.mubr.f32.mxu0 0.0
        %712 = vmatmul.mubr.f32.gmra.mrb[0].mxu0 %v366
        %v713 = vpop.f32.mrb[0].mxu0
        %v714 = vadd.f32 0.0, %v713
        %v715 = vpop.f32.mrb[0].mxu0
        %716 = vmatprep.mubr.f32.mxu0 0.0
        %717 = vmatmul.mubr.f32.gmra.mrb[0].mxu0 %v367
        %v718 = vpop.f32.mrb[0].mxu0
        %v719 = vadd.f32 0.0, %v718
        %v720 = vpop.f32.mrb[0].mxu0
        %721 = vmatprep.mubr.f32.mxu0 0.0
        %722 = vmatmul.mubr.f32.gmra.mrb[0].mxu0 %v368
        %v723 = vpop.f32.mrb[0].mxu0
        %v724 = vadd.f32 0.0, %v723
        %v725 = vpop.f32.mrb[0].mxu0
        %726 = vmatprep.mubr.f32.mxu0 0.0
        %727 = vmatmul.mubr.f32.gmra.mrb[0].mxu0 %v369
        %v728 = vpop.f32.mrb[0].mxu0
        %v729 = vadd.f32 0.0, %v728
        %v730 = vpop.f32.mrb[0].mxu0
        %731 = vmatprep.mubr.f32.mxu0 0.0
        %732 = vmatmul.mubr.f32.gmra.mrb[0].mxu0 %v370
        %v733 = vpop.f32.mrb[0].mxu0
        %v734 = vadd.f32 0.0, %v733
        %v735 = vpop.f32.mrb[0].mxu0
        %736 = vmatprep.mubr.f32.mxu0 0.0
        %737 = vmatmul.mubr.f32.gmra.mrb[0].mxu0 %v371
        %v738 = vpop.f32.mrb[0].mxu0
        %v739 = vadd.f32 0.0, %v738
        %v740 = vpop.f32.mrb[0].mxu0
        %741 = vmatprep.mubr.f32.mxu0 0.0
        %742 = vmatmul.mubr.f32.gmra.mrb[0].mxu0 %v372
        %v743 = vpop.f32.mrb[0].mxu0
        %v744 = vadd.f32 0.0, %v743
        %v745 = vpop.f32.mrb[0].mxu0
        %746 = vmatprep.mubr.f32.mxu0 0.0
        %747 = vmatmul.mubr.f32.gmra.mrb[0].mxu0 %v373
        %v748 = vpop.f32.mrb[0].mxu0
        %v749 = vadd.f32 0.0, %v748
        %v750 = vpop.f32.mrb[0].mxu0
        %751 = vmatprep.mubr.f32.mxu0 0.0
        %752 = vmatmul.mubr.f32.gmra.mrb[0].mxu0 %v374
        %v753 = vpop.f32.mrb[0].mxu0
        %v754 = vadd.f32 0.0, %v753
        %v755 = vpop.f32.mrb[0].mxu0
        %756 = vmatprep.mubr.f32.mxu0 0.0
        %757 = vmatmul.mubr.f32.gmra.mrb[0].mxu0 %v375
        %v758 = vpop.f32.mrb[0].mxu0
        %v759 = vadd.f32 0.0, %v758
        %v760 = vpop.f32.mrb[0].mxu0
        %761 = vmatprep.mubr.f32.mxu0 0.0
        %762 = vmatmul.mubr.f32.gmra.mrb[0].mxu0 %v376
        %v763 = vpop.f32.mrb[0].mxu0
        %v764 = vadd.f32 0.0, %v763
        %v765 = vpop.f32.mrb[0].mxu0
        %766 = vmatprep.mubr.f32.mxu0 0.0
        %767 = vmatmul.mubr.f32.gmra.mrb[0].mxu0 %v377
        %v768 = vpop.f32.mrb[0].mxu0
        %v769 = vadd.f32 0.0, %v768
        %v770 = vpop.f32.mrb[0].mxu0
        %771 = vmatprep.mubr.f32.mxu0 0.0
        %772 = vmatmul.mubr.f32.gmra.mrb[0].mxu0 %v378
        %v773 = vpop.f32.mrb[0].mxu0
        %v774 = vadd.f32 0.0, %v773
        %v775 = vpop.f32.mrb[0].mxu0
        %776 = vmatprep.mubr.f32.mxu0 0.0
        %777 = vmatmul.mubr.f32.gmra.mrb[0].mxu0 %v379
        %v778 = vpop.f32.mrb[0].mxu0
        %v779 = vadd.f32 0.0, %v778
        %v780 = vpop.f32.mrb[0].mxu0
        %781 = vdwg.mxu0
        %v782 = vadd.f32 %v252, %v464
        %v783 = vadd.f32 %v253, %v469
        %v784 = vadd.f32 %v254, %v474
        %v785 = vadd.f32 %v255, %v479
        %v786 = vadd.f32 %v256, %v484
        %v787 = vadd.f32 %v257, %v489
        %v788 = vadd.f32 %v258, %v494
        %v789 = vadd.f32 %v259, %v499
        %v790 = vadd.f32 %v260, %v504
        %v791 = vadd.f32 %v261, %v509
        %v792 = vadd.f32 %v262, %v514
        %v793 = vadd.f32 %v263, %v519
        %v794 = vadd.f32 %v264, %v524
        %v795 = vadd.f32 %v265, %v529
        %v796 = vadd.f32 %v266, %v534
        %v797 = vadd.f32 %v267, %v539
        %v798 = vadd.f32 %v268, %v544
        %v799 = vadd.f32 %v269, %v549
        %v800 = vadd.f32 %v270, %v554
        %v801 = vadd.f32 %v271, %v559
        %v802 = vadd.f32 %v272, %v564
        %v803 = vadd.f32 %v273, %v569
        %v804 = vadd.f32 %v274, %v574
        %v805 = vadd.f32 %v275, %v579
        %v806 = vadd.f32 %v276, %v584
        %v807 = vadd.f32 %v277, %v589
        %v808 = vadd.f32 %v278, %v594
        %v809 = vadd.f32 %v279, %v599
        %v810 = vadd.f32 %v280, %v604
        %v811 = vadd.f32 %v281, %v609
        %v812 = vadd.f32 %v282, %v614
        %v813 = vadd.f32 %v283, %v619
        %v814 = vadd.f32 %v284, %v624
        %v815 = vadd.f32 %v285, %v629
        %v816 = vadd.f32 %v286, %v634
        %v817 = vadd.f32 %v287, %v639
        %v818 = vadd.f32 %v288, %v644
        %v819 = vadd.f32 %v289, %v649
        %v820 = vadd.f32 %v290, %v654
        %v821 = vadd.f32 %v291, %v659
        %v822 = vadd.f32 %v292, %v664
        %v823 = vadd.f32 %v293, %v669
        %v824 = vadd.f32 %v294, %v674
        %v825 = vadd.f32 %v295, %v679
        %v826 = vadd.f32 %v296, %v684
        %v827 = vadd.f32 %v297, %v689
        %v828 = vadd.f32 %v298, %v694
        %v829 = vadd.f32 %v299, %v699
        %v830 = vadd.f32 %v300, %v704
        %v831 = vadd.f32 %v301, %v709
        %v832 = vadd.f32 %v302, %v714
        %v833 = vadd.f32 %v303, %v719
        %v834 = vadd.f32 %v304, %v724
        %v835 = vadd.f32 %v305, %v729
        %v836 = vadd.f32 %v306, %v734
        %v837 = vadd.f32 %v307, %v739
        %v838 = vadd.f32 %v308, %v744
        %v839 = vadd.f32 %v309, %v749
        %v840 = vadd.f32 %v310, %v754
        %v841 = vadd.f32 %v311, %v759
        %v842 = vadd.f32 %v312, %v764
        %v843 = vadd.f32 %v313, %v769
        %v844 = vadd.f32 %v314, %v774
        %v845 = vadd.f32 %v315, %v779
        %vm846 = vcmask 130048
        %847 = vst.msk [vmem:[%s180] sm:$0xff] %vm846, %v782
        %848 = vst.msk [vmem:[%s180 + $0x8] sm:$0xff] %vm846, %v783
        %849 = vst.msk [vmem:[%s180 + $0x10] sm:$0xff] %vm846, %v784
        %850 = vst.msk [vmem:[%s180 + $0x18] sm:$0xff] %vm846, %v785
        %851 = vst.msk [vmem:[%s180 + $0x20] sm:$0xff] %vm846, %v786
        %852 = vst.msk [vmem:[%s180 + $0x28] sm:$0xff] %vm846, %v787
        %853 = vst.msk [vmem:[%s180 + $0x30] sm:$0xff] %vm846, %v788
        %854 = vst.msk [vmem:[%s180 + $0x38] sm:$0xff] %vm846, %v789
        %855 = vst.msk [vmem:[%s180 + $0x40] sm:$0xff] %vm846, %v790
        %856 = vst.msk [vmem:[%s180 + $0x48] sm:$0xff] %vm846, %v791
        %857 = vst.msk [vmem:[%s180 + $0x50] sm:$0xff] %vm846, %v792
        %858 = vst.msk [vmem:[%s180 + $0x58] sm:$0xff] %vm846, %v793
        %859 = vst.msk [vmem:[%s180 + $0x60] sm:$0xff] %vm846, %v794
        %860 = vst.msk [vmem:[%s180 + $0x68] sm:$0xff] %vm846, %v795
        %861 = vst.msk [vmem:[%s180 + $0x70] sm:$0xff] %vm846, %v796
        %862 = vst.msk [vmem:[%s180 + $0x78] sm:$0xff] %vm846, %v797
        %863 = vst.msk [vmem:[%s180 + $0x80] sm:$0xff] %vm846, %v798
        %864 = vst.msk [vmem:[%s180 + $0x88] sm:$0xff] %vm846, %v799
        %865 = vst.msk [vmem:[%s180 + $0x90] sm:$0xff] %vm846, %v800
        %866 = vst.msk [vmem:[%s180 + $0x98] sm:$0xff] %vm846, %v801
        %867 = vst.msk [vmem:[%s180 + $0xa0] sm:$0xff] %vm846, %v802
        %868 = vst.msk [vmem:[%s180 + $0xa8] sm:$0xff] %vm846, %v803
        %869 = vst.msk [vmem:[%s180 + $0xb0] sm:$0xff] %vm846, %v804
        %870 = vst.msk [vmem:[%s180 + $0xb8] sm:$0xff] %vm846, %v805
        %871 = vst.msk [vmem:[%s180 + $0xc0] sm:$0xff] %vm846, %v806
        %872 = vst.msk [vmem:[%s180 + $0xc8] sm:$0xff] %vm846, %v807
        %873 = vst.msk [vmem:[%s180 + $0xd0] sm:$0xff] %vm846, %v808
        %874 = vst.msk [vmem:[%s180 + $0xd8] sm:$0xff] %vm846, %v809
        %875 = vst.msk [vmem:[%s180 + $0xe0] sm:$0xff] %vm846, %v810
        %876 = vst.msk [vmem:[%s180 + $0xe8] sm:$0xff] %vm846, %v811
        %877 = vst.msk [vmem:[%s180 + $0xf0] sm:$0xff] %vm846, %v812
        %878 = vst.msk [vmem:[%s180 + $0xf8] sm:$0xff] %vm846, %v813
        %879 = vst.msk [vmem:[%s180 + $0x100] sm:$0xff] %vm846, %v814
        %880 = vst.msk [vmem:[%s180 + $0x108] sm:$0xff] %vm846, %v815
        %881 = vst.msk [vmem:[%s180 + $0x110] sm:$0xff] %vm846, %v816
        %882 = vst.msk [vmem:[%s180 + $0x118] sm:$0xff] %vm846, %v817
        %883 = vst.msk [vmem:[%s180 + $0x120] sm:$0xff] %vm846, %v818
        %884 = vst.msk [vmem:[%s180 + $0x128] sm:$0xff] %vm846, %v819
        %885 = vst.msk [vmem:[%s180 + $0x130] sm:$0xff] %vm846, %v820
        %886 = vst.msk [vmem:[%s180 + $0x138] sm:$0xff] %vm846, %v821
        %887 = vst.msk [vmem:[%s180 + $0x140] sm:$0xff] %vm846, %v822
        %888 = vst.msk [vmem:[%s180 + $0x148] sm:$0xff] %vm846, %v823
        %889 = vst.msk [vmem:[%s180 + $0x150] sm:$0xff] %vm846, %v824
        %890 = vst.msk [vmem:[%s180 + $0x158] sm:$0xff] %vm846, %v825
        %891 = vst.msk [vmem:[%s180 + $0x160] sm:$0xff] %vm846, %v826
        %892 = vst.msk [vmem:[%s180 + $0x168] sm:$0xff] %vm846, %v827
        %893 = vst.msk [vmem:[%s180 + $0x170] sm:$0xff] %vm846, %v828
        %894 = vst.msk [vmem:[%s180 + $0x178] sm:$0xff] %vm846, %v829
        %895 = vst.msk [vmem:[%s180 + $0x180] sm:$0xff] %vm846, %v830
        %896 = vst.msk [vmem:[%s180 + $0x188] sm:$0xff] %vm846, %v831
        %897 = vst.msk [vmem:[%s180 + $0x190] sm:$0xff] %vm846, %v832
        %898 = vst.msk [vmem:[%s180 + $0x198] sm:$0xff] %vm846, %v833
        %899 = vst.msk [vmem:[%s180 + $0x1a0] sm:$0xff] %vm846, %v834
        %900 = vst.msk [vmem:[%s180 + $0x1a8] sm:$0xff] %vm846, %v835
        %901 = vst.msk [vmem:[%s180 + $0x1b0] sm:$0xff] %vm846, %v836
        %902 = vst.msk [vmem:[%s180 + $0x1b8] sm:$0xff] %vm846, %v837
        %903 = vst.msk [vmem:[%s180 + $0x1c0] sm:$0xff] %vm846, %v838
        %904 = vst.msk [vmem:[%s180 + $0x1c8] sm:$0xff] %vm846, %v839
        %905 = vst.msk [vmem:[%s180 + $0x1d0] sm:$0xff] %vm846, %v840
        %906 = vst.msk [vmem:[%s180 + $0x1d8] sm:$0xff] %vm846, %v841
        %907 = vst.msk [vmem:[%s180 + $0x1e0] sm:$0xff] %vm846, %v842
        %908 = vst.msk [vmem:[%s180 + $0x1e8] sm:$0xff] %vm846, %v843
        %909 = vst.msk [vmem:[%s180 + $0x1f0] sm:$0xff] %vm846, %v844
        %910 = vst.msk [vmem:[%s180 + $0x1f8] sm:$0xff] %vm846, %v845
        %s911 = smul.u32 64, %s20
        %p912 = scmp.lt.s32.totalorder %s911, 127
        %s913 = scalar_select %p912, %s911, 127
        %s914 = smul.addr %s913, 8
        %s915 = scalar_lea.vmem %s2, %s914
        // Predicated region
        $region37: #{tpu_custom_call.1} parent=27 // pred_check
          %p916 = pneg %p95
        $region38: #{tpu_custom_call.1} parent=27 // pred_check_branch
          %918 = sbr.rel (%p916) target = $region40
        $region39: #{tpu_custom_call.1} parent=27 // pred_region
          %s919 = smul.u32 64, %s20
        $region40: #{tpu_custom_call.1} parent=27 // pred_fallthru
          _
      $region28: #{tpu_custom_call.1} parent=5 // pred_fallthru
        _
      %p920 = scmp.le.s32.totalorder 2, %s11
      // Predicated region
      $region41: #{tpu_custom_call.1} parent=5 // pred_check
        %p921 = pneg %p920
      $region42: #{tpu_custom_call.1} parent=5 // pred_check_branch
        %923 = sbr.rel (%p921) target = $region44
      $region43: #{tpu_custom_call.1} parent=5 // pred_region
        %s924 = ssub.s32 %s11, 2
        // Predicated region
        $region45: #{tpu_custom_call.1} parent=43 // pred_check
          %p925 = pneg %p101
        $region46: #{tpu_custom_call.1} parent=43 // pred_check_branch
          %927 = sbr.rel (%p925) target = $region48
        $region47: #{tpu_custom_call.1} parent=43 // pred_region
          %s928 = smul.u32 64, %s22
          %p929 = scmp.lt.s32.totalorder %s928, 127
          %s930 = scalar_select %p929, %s928, 127
          %s931 = smul.addr %s930, 8
          %s932 = scalar_lea.vmem %s2, %s931
        $region48: #{tpu_custom_call.1} parent=43 // pred_fallthru
          _
      $region44: #{tpu_custom_call.1} parent=5 // pred_fallthru
        _
    $region6: #{tpu_custom_call.1} parent=1 // loop_footer
      %s15 = sadd.s32 1, %s11
    $region7: #{tpu_custom_call.1} parent=1 // loop_footer_branch
      %10 = sbr.rel target = $region3
    $region8: #{tpu_custom_call.1} parent=1 // loop_exit
      _
    %933 = vsyncpa [#allocation3], 1
    %s934 = scalar_lea.sflag [#allocation3], 1
    %935 = vsyncpa %s934, 1

</llo_original>
